<compile_context>
chip_gen: v5e
topology: v5e:2x2
jax: 0.10.0
libtpu: 0.0.40
codegen_flags: <defaults>
</compile_context>

<pallas_src>
from functools import partial

import jax
import jax.numpy as jnp
from jax.experimental import pallas as pl
from jax.experimental.pallas import tpu as pltpu


# ----------------------------------------------------------------------------
# The generic Partial wrapper (exact semantics of the PyTorch module).
# ----------------------------------------------------------------------------
class Partial:
    """JAX equivalent of kitsu's `Partial` nn.Module.

    Binds `*args` / `**kwargs` of an arbitrary callable at construction time;
    forward (__call__) applies the bound callable to the remaining arguments.
    """

    def __init__(self, __func, *args, **kwargs) -> None:
        self.fn = partial(__func, *args, **kwargs)

    def __call__(self, *args, **kwargs):
        return self.fn(*args, **kwargs)


# ----------------------------------------------------------------------------
# Pallas-backed elementwise leaky_relu (the callable Partial typically wraps).
# ----------------------------------------------------------------------------
def _leaky_relu_kernel(slope_ref, x_ref, o_ref):
    # slope lives in SMEM -> the compiled kernel is slope-agnostic (no retrace
    # per distinct negative_slope value).  Cast keeps compute in input dtype.
    x = x_ref[...]
    slope = slope_ref[0, 0].astype(x.dtype)
    o_ref[...] = jnp.where(x >= 0, x, x * slope)


def _round_up(a, b):
    return -(-a // b) * b


_LANES = 512                    # lane-dense last dim: large multiple of 128
_TILE_BYTES = 2 * 1024 * 1024   # per-operand tile; 2x(in+out) double-buffered
                                # = 8 MiB, fits v5e/v6e/v7x VMEM budgets
_MIN_PALLAS_BYTES = 1 << 20     # below ~1 MiB, let XLA fuse the elementwise op


def leaky_relu_pallas(x, negative_slope=0.01, *, min_pallas_bytes=_MIN_PALLAS_BYTES):
    """Elementwise leaky_relu on an arbitrary-shape tensor via a tiled Pallas kernel."""
    orig_shape = x.shape
    dtype = x.dtype
    n = x.size
    itemsize = jnp.dtype(dtype).itemsize

    # Tiny tensors: custom-call overhead dominates; plain jnp is fused by XLA.
    if n * itemsize < min_pallas_bytes:
        return jnp.where(x >= 0, x, x * jnp.asarray(negative_slope, dtype))

    # Sublane packing rule: second-to-last block dim multiple of 8 (f32),
    # 16 (bf16), 32 (int8).
    sublane = {4: 8, 2: 16, 1: 32}.get(itemsize, 8)
    max_rows = max(_TILE_BYTES // (_LANES * itemsize), sublane)

    rows = _round_up(n, _LANES) // _LANES
    block_rows = min(_round_up(rows, sublane), _round_up(max_rows, sublane))
    rows_padded = _round_up(rows, block_rows)
    grid_rows = rows_padded // block_rows

    # Flatten + zero-pad to an exactly-divisible lane-dense 2-D slab.
    # leaky_relu(0) == 0, and the padded tail is sliced off afterwards, so
    # padding never leaks into the logical output.
    flat = x.reshape(-1)
    pad = rows_padded * _LANES - n
    if pad:
        flat = jnp.pad(flat, (0, pad))
    x2 = flat.reshape(rows_padded, _LANES)

    slope = jnp.asarray(negative_slope, jnp.float32).reshape(1, 1)

    out2 = pl.pallas_call(
        _leaky_relu_kernel,
        out_shape=jax.ShapeDtypeStruct((rows_padded, _LANES), dtype),
        grid=(grid_rows,),
        in_specs=[
            # Bound scalar argument -> SMEM (whole array, no blocking).
            pl.BlockSpec(memory_space=pltpu.MemorySpace.SMEM),
            # Activation tiles: auto-pipelined (prefetch i+1 / writeback i-1).
            pl.BlockSpec((block_rows, _LANES), lambda i: (i, 0)),
        ],
        out_specs=pl.BlockSpec((block_rows, _LANES), lambda i: (i, 0)),
        compiler_params=pltpu.CompilerParams(
            dimension_semantics=("parallel",),      # megacore sharding on v7x
            vmem_limit_bytes=32 * 1024 * 1024,      # explicit, safe on all gens
        ),
    )(slope, x2)

    out = out2.reshape(-1)
    if pad:
        out = out[:n]
    return out.reshape(orig_shape)


# TODO(synk): `Partial` can wrap arbitrary callables; only the elementwise
# leaky_relu instantiation is given a dedicated Pallas hot path here.


if __name__ == "__main__":
    def ref_leaky_relu(x, slope):
        return jnp.where(x >= 0, x, x * jnp.asarray(slope, x.dtype))

    # Equivalent of:  Partial(F.leaky_relu, negative_slope=0.1)
    # (min_pallas_bytes=0 forces the Pallas path even at demo size so the
    #  kernel itself is exercised.)
    module = Partial(leaky_relu_pallas, negative_slope=0.1, min_pallas_bytes=0)

    # Primary demo shape (NCHW).
    x = jax.random.normal(jax.random.PRNGKey(0), (2, 4, 16, 16), dtype=jnp.float32)
    y = jax.block_until_ready(module(x))
    assert y.shape == x.shape and y.dtype == x.dtype
    assert jnp.allclose(y, ref_leaky_relu(x, 0.1), atol=1e-6, rtol=1e-6)

    # Odd spatial dims (7x7) -> exercises the pad-to-lane-dense path.
    x_odd = jax.random.normal(jax.random.PRNGKey(1), (2, 3, 7, 7), dtype=jnp.float32)
    y_odd = jax.block_until_ready(module(x_odd))
    assert jnp.allclose(y_odd, ref_leaky_relu(x_odd, 0.1), atol=1e-6, rtol=1e-6)

    # Multi-tile grid (2 grid steps, 4 MiB) -> exercises the pipelined path.
    x_big = jax.random.normal(jax.random.PRNGKey(2), (2, 32, 128, 128), dtype=jnp.float32)
    y_big = jax.block_until_ready(module(x_big))
    assert jnp.allclose(y_big, ref_leaky_relu(x_big, 0.1), atol=1e-6, rtol=1e-6)

    # Default wrapper: small input takes the fused-XLA fast path (no Pallas).
    small_module = Partial(leaky_relu_pallas, negative_slope=0.1)
    y_small = jax.block_until_ready(small_module(x))
    assert jnp.allclose(y_small, ref_leaky_relu(x, 0.1), atol=1e-6, rtol=1e-6)

    print("KERNEL_OK")
</pallas_src>

<mosaic_0001>
module attributes {stable_mosaic.version = 11 : i64} {
  func.func @_leaky_relu_kernel(%arg0: i32, %arg1: memref<1x1xf32, #tpu.memory_space<smem>>, %arg2: memref<8x512xf32, #tpu.memory_space<vmem>>, %arg3: memref<8x512xf32, #tpu.memory_space<vmem>>) attributes {dimension_semantics = [#tpu.dimension_semantics<parallel>], iteration_bounds = array<i64: 1>, scalar_prefetch = 0 : i64, scratch_operands = 0 : i64, tpu.core_type = #tpu.core_type<tc>, window_params = [{transform_indices = @transform_0, window_bounds = array<i64: 1, 1>}, {transform_indices = @transform_1, window_bounds = array<i64: 8, 512>}, {transform_indices = @transform_2, window_bounds = array<i64: 8, 512>}]} {
    %c0 = arith.constant 0 : index
    %c0_0 = arith.constant 0 : index
    %0 = vector.load %arg2[%c0, %c0_0] : memref<8x512xf32, #tpu.memory_space<vmem>>, vector<8x512xf32>
    %c0_1 = arith.constant 0 : index
    %c0_2 = arith.constant 0 : index
    %1 = memref.load %arg1[%c0_1, %c0_2] : memref<1x1xf32, #tpu.memory_space<smem>>
    %cst = arith.constant 0.000000e+00 : f32
    %2 = vector.broadcast %cst : f32 to vector<8x512xf32>
    %3 = arith.cmpf oge, %0, %2 : vector<8x512xf32>
    %4 = vector.broadcast %1 : f32 to vector<8x512xf32>
    %5 = arith.mulf %0, %4 : vector<8x512xf32>
    %6 = arith.select %3, %0, %5 : vector<8x512xi1>, vector<8x512xf32>
    %c0_3 = arith.constant 0 : index
    %c0_4 = arith.constant 0 : index
    %7 = vector.load %arg3[%c0_3, %c0_4] : memref<8x512xf32, #tpu.memory_space<vmem>>, vector<8x512xf32>
    tpu.vector_store %arg3[%c0_3, %c0_4], %6 {strides = array<i32>} : memref<8x512xf32, #tpu.memory_space<vmem>>, vector<8x512xf32>,
    return
  }
  func.func @transform_0(%arg0: i32) -> (i32, i32) {
    %c0_i32 = arith.constant 0 : i32
    %c0_i32_0 = arith.constant 0 : i32
    %c0_i32_1 = arith.constant 0 : i32
    return %c0_i32, %c0_i32_0 : i32, i32
  }
  func.func @transform_1(%arg0: i32) -> (i32, i32) {
    %c0_i32 = arith.constant 0 : i32
    %c0_i32_0 = arith.constant 0 : i32
    return %arg0, %c0_i32 : i32, i32
  }
  func.func @transform_2(%arg0: i32) -> (i32, i32) {
    %c0_i32 = arith.constant 0 : i32
    %c0_i32_0 = arith.constant 0 : i32
    return %arg0, %c0_i32 : i32, i32
  }
}

</mosaic_0001>

<llo_original>
// kernel: tpu_custom_call.1
$region0: #{tpu_custom_call.1}
  #allocation0 [shape = 'u32[]', space=smem, size = 0x4, offset = 0x4, fixed_abs, tag = 'smem constant byte address 0x4 - core index']
  #allocation1 [shape = 'u32[72,128]{1,0:T(1,128)}', space=vmem, size = 0x9000, scoped, tag = 'internal scratch']
  #allocation2 [shape = 'f32[1,1]{1,0:T(1,128)S(6)}', space=smem, size = 0x200, scoped, tag = 'scoped memory for tpu_custom_call.1']
  %s0 = inlined_call_operand.<no memory space> [shape: f32[1,1], index: 0, kind: input, shape index: {}]
  %s1 = inlined_call_operand.hbm [shape: f32[8,512], index: 1, kind: input, shape index: {}]
  %s2 = inlined_call_operand.hbm [shape: f32[8,512], index: 2, kind: output, shape index: {}]
  %s3 = sld [smem:[#allocation0]]
  $region22: #{tpu_custom_call.1} parent=0
    _
  %s5 = ssub.s32 1, %s3
  %s6 = scalar_select 0, %s5, %s3
  %7 = sst [smem:[#allocation2]] %s0
  $region1: #{tpu_custom_call.1} parent=0
    #allocation3 [shape = 'u8[16384]{0}', space=vmem, size = 0x4000, scoped, tag = 'input window, operand 1, single buffered']
    #allocation4 [shape = 's32[1]{0}', space=sflag, size = 0x4, scoped, tag = 'scoped memory for tpu_custom_call.1']
    #allocation5 [shape = 's32[1]{0}', space=sflag, size = 0x4, scoped, tag = 'scoped memory for tpu_custom_call.1']
    #allocation6 [shape = 'u8[16384]{0}', space=vmem, size = 0x4000, scoped, tag = 'output window, operand 0, single buffered']
    %8 = vsyncpa [#allocation4], 0
    %9 = vsyncpa [#allocation5], 0
    // Predicated region
    $region2: #{tpu_custom_call.1} parent=1 // pred_check
      _
    $region3: #{tpu_custom_call.1} parent=1 // pred_check_branch
      %11 = sbr.rel (0) target = $region5
    $region4: #{tpu_custom_call.1} parent=1 // pred_region
      _
    $region5: #{tpu_custom_call.1} parent=1 // pred_fallthru
      _
    // Predicated region
    $region6: #{tpu_custom_call.1} parent=1 // pred_check
      _
    $region7: #{tpu_custom_call.1} parent=1 // pred_check_branch
      %13 = sbr.rel (0) target = $region9
    $region8: #{tpu_custom_call.1} parent=1 // pred_region
      %15 = vsyncadd [#allocation4], 0
      %s17 = sshll.u32 %s1, 4
      %s18 = int_to_ptr.hbm [resolvable:$true] %s17
      %s19 = sshll.u32 [#allocation3], 4
      %s20 = int_to_ptr.vmem [resolvable:$true] %s19
      %22 = dma.hbm_to_vmem [thread:$0]  %s18, 512, %s20, [#allocation4]
    $region9: #{tpu_custom_call.1} parent=1 // pred_fallthru
      _
    // Predicated region
    $region10: #{tpu_custom_call.1} parent=1 // pred_check
      _
    $region11: #{tpu_custom_call.1} parent=1 // pred_check_branch
      %24 = sbr.rel (0) target = $region13
    $region12: #{tpu_custom_call.1} parent=1 // pred_region
      %26 = dma.done [#allocation4], 512
    $region13: #{tpu_custom_call.1} parent=1 // pred_fallthru
      _
    %v27 = vld [vmem:[#allocation3] sm:$0xff]
    %v28 = vld [vmem:[#allocation3 + $0x8] sm:$0xff]
    %v29 = vld [vmem:[#allocation3 + $0x10] sm:$0xff]
    %v30 = vld [vmem:[#allocation3 + $0x18] sm:$0xff]
    %s31 = sld [smem:[#allocation2]]
    %vm32 = vcmp.ge.f32.partialorder %v27, 0.0
    %vm33 = vcmp.ge.f32.partialorder %v28, 0.0
    %vm34 = vcmp.ge.f32.partialorder %v29, 0.0
    %vm35 = vcmp.ge.f32.partialorder %v30, 0.0
    %v36 = vstv %s31
    %v37 = vmul.f32 %v27, %v36
    %v38 = vmul.f32 %v28, %v36
    %v39 = vmul.f32 %v29, %v36
    %v40 = vmul.f32 %v30, %v36
    %v41 = vsel %vm32, %v27, %v37
    %v42 = vsel %vm33, %v28, %v38
    %v43 = vsel %vm34, %v29, %v39
    %v44 = vsel %vm35, %v30, %v40
    %45 = vst [vmem:[#allocation6] sm:$0xff] %v41
    %46 = vst [vmem:[#allocation6 + $0x8] sm:$0xff] %v42
    %47 = vst [vmem:[#allocation6 + $0x10] sm:$0xff] %v43
    %48 = vst [vmem:[#allocation6 + $0x18] sm:$0xff] %v44
    // Predicated region
    $region14: #{tpu_custom_call.1} parent=1 // pred_check
      _
    $region15: #{tpu_custom_call.1} parent=1 // pred_check_branch
      %50 = sbr.rel (0) target = $region17
    $region16: #{tpu_custom_call.1} parent=1 // pred_region
      %52 = vsyncadd [#allocation5], 0
      %s54 = sshll.u32 [#allocation6], 4
      %s55 = int_to_ptr.vmem [resolvable:$true] %s54
      %s56 = sshll.u32 %s2, 4
      %s57 = int_to_ptr.hbm [resolvable:$true] %s56
      %59 = dma.vmem_to_hbm [thread:$0]  %s55, 512, %s57, [#allocation5]
    $region17: #{tpu_custom_call.1} parent=1 // pred_fallthru
      _
    // Predicated region
    $region18: #{tpu_custom_call.1} parent=1 // pred_check
      _
    $region19: #{tpu_custom_call.1} parent=1 // pred_check_branch
      %61 = sbr.rel (0) target = $region21
    $region20: #{tpu_custom_call.1} parent=1 // pred_region
      %63 = dma.done [#allocation5], 512
    $region21: #{tpu_custom_call.1} parent=1 // pred_fallthru
      _
    %64 = vsyncpa [#allocation4], 1
    %65 = vsyncpa [#allocation5], 1

</llo_original>
